<compile_context>
chip_gen: v6e
topology: v6e:2x2x1
jax: 0.10.0
libtpu: 0.0.40
codegen_flags: <defaults>
</compile_context>

<pallas_src>
import functools

import jax
import jax.numpy as jnp
from jax.experimental import pallas as pl
from jax.experimental.pallas import tpu as pltpu


def _round_up(x, m):
    return ((x + m - 1) // m) * m


def _pad2d(a, rows, cols):
    r, c = a.shape
    if r == rows and c == cols:
        return a
    return jnp.pad(a, ((0, rows - r), (0, cols - c)))


# ---------------------------------------------------------------------------
# Kernels: tiled matmul with f32 accumulator; epilogue = bias
#          [+ residual | + fused 1x1 shortcut conv] [+ relu]
# ---------------------------------------------------------------------------
def _mm_bias_kernel(x_ref, w_ref, b_ref, o_ref, acc_ref, *, apply_relu):
    k = pl.program_id(2)

    @pl.when(k == 0)
    def _():
        acc_ref[...] = jnp.zeros_like(acc_ref)

    acc_ref[...] += jnp.dot(x_ref[...], w_ref[...],
                            preferred_element_type=jnp.float32)

    @pl.when(k == pl.num_programs(2) - 1)
    def _():
        out = acc_ref[...] + b_ref[...]
        if apply_relu:
            out = jnp.maximum(out, 0.0)
        o_ref[...] = out.astype(o_ref.dtype)


def _mm_bias_res_kernel(x_ref, w_ref, b_ref, r_ref, o_ref, acc_ref, *, apply_relu):
    k = pl.program_id(2)

    @pl.when(k == 0)
    def _():
        acc_ref[...] = jnp.zeros_like(acc_ref)

    acc_ref[...] += jnp.dot(x_ref[...], w_ref[...],
                            preferred_element_type=jnp.float32)

    @pl.when(k == pl.num_programs(2) - 1)
    def _():
        out = acc_ref[...] + b_ref[...] + r_ref[...].astype(jnp.float32)
        if apply_relu:
            out = jnp.maximum(out, 0.0)
        o_ref[...] = out.astype(o_ref.dtype)


def _mm_bias_sc_kernel(x_ref, w_ref, b_ref, sp_ref, sw_ref, o_ref, acc_ref,
                       *, apply_relu):
    k = pl.program_id(2)

    @pl.when(k == 0)
    def _():
        acc_ref[...] = jnp.zeros_like(acc_ref)

    acc_ref[...] += jnp.dot(x_ref[...], w_ref[...],
                            preferred_element_type=jnp.float32)

    @pl.when(k == pl.num_programs(2) - 1)
    def _():
        # fused shortcut: 1x1-conv-as-matmul done once in the epilogue.
        sc = jnp.dot(sp_ref[...], sw_ref[...],
                     preferred_element_type=jnp.float32)
        out = acc_ref[...] + b_ref[...] + sc
        if apply_relu:
            out = jnp.maximum(out, 0.0)
        o_ref[...] = out.astype(o_ref.dtype)


def fused_conv_bn(patches, w_folded, bias, *, residual=None,
                  sc_patches=None, sc_w=None, apply_relu=True,
                  tm=512, tn=256, tk=256):
    """(patches @ w_folded) + bias [+ residual | + sc_patches @ sc_w] [ReLU].

    patches: (M, K), w_folded: (K, Cout) with BN scale pre-folded,
    bias: (1, Cout). Inputs are cast to bf16 for the MXU (f32 accumulation);
    residual is kept f32. Returns f32 (M, Cout).
    """
    M, K = patches.shape
    Kw, cout = w_folded.shape
    assert K == Kw

    # Clamp / align tile sizes to the (8, 128) layout rule and pad the problem
    # so Cout and K are lane-dense multiples of 128 (unmasked stores, full MXU).
    tm = min(tm, _round_up(M, 8))
    tn = min(tn, _round_up(cout, 128))
    tk = min(tk, _round_up(K, 128))
    Mp, Kp, Np = _round_up(M, tm), _round_up(K, tk), _round_up(cout, tn)

    x_p = _pad2d(patches.astype(jnp.bfloat16), Mp, Kp)
    w_p = _pad2d(w_folded.astype(jnp.bfloat16), Kp, Np)
    b_p = _pad2d(bias.reshape(1, -1).astype(jnp.float32), 1, Np)

    grid = (Mp // tm, Np // tn, Kp // tk)

    in_specs = [
        pl.BlockSpec((tm, tk), lambda i, j, k: (i, k)),   # patches tile
        pl.BlockSpec((tk, tn), lambda i, j, k: (k, j)),   # weight tile
        pl.BlockSpec((1, tn), lambda i, j, k: (0, j)),    # bias row
    ]
    operands = [x_p, w_p, b_p]
    flops = 2 * Mp * Kp * Np
    bytes_accessed = int(x_p.size * 2 * grid[1] + w_p.size * 2 * grid[0]
                         + Mp * Np * 4)

    if sc_patches is not None:
        Ks = sc_patches.shape[1]
        Ksp = _round_up(Ks, 128)
        sp_p = _pad2d(sc_patches.astype(jnp.bfloat16), Mp, Ksp)
        sw_p = _pad2d(sc_w.astype(jnp.bfloat16), Ksp, Np)
        in_specs += [
            pl.BlockSpec((tm, Ksp), lambda i, j, k: (i, 0)),  # shortcut patches
            pl.BlockSpec((Ksp, tn), lambda i, j, k: (0, j)),  # shortcut weights
        ]
        operands += [sp_p, sw_p]
        kernel = functools.partial(_mm_bias_sc_kernel, apply_relu=apply_relu)
        flops += 2 * Mp * Ksp * Np
        bytes_accessed += int(sp_p.size * 2 + sw_p.size * 2)
    elif residual is not None:
        r_p = _pad2d(residual.astype(jnp.float32), Mp, Np)
        in_specs += [pl.BlockSpec((tm, tn), lambda i, j, k: (i, j))]
        operands += [r_p]
        kernel = functools.partial(_mm_bias_res_kernel, apply_relu=apply_relu)
        bytes_accessed += int(r_p.size * 4)
    else:
        kernel = functools.partial(_mm_bias_kernel, apply_relu=apply_relu)

    out = pl.pallas_call(
        kernel,
        out_shape=jax.ShapeDtypeStruct((Mp, Np), jnp.float32),
        grid_spec=pltpu.PrefetchScalarGridSpec(
            num_scalar_prefetch=0,
            grid=grid,
            in_specs=in_specs,
            out_specs=pl.BlockSpec((tm, tn), lambda i, j, k: (i, j)),
            scratch_shapes=[pltpu.VMEM((tm, tn), jnp.float32)],
        ),
        compiler_params=pltpu.CompilerParams(
            dimension_semantics=("parallel", "parallel", "arbitrary"),
            vmem_limit_bytes=48 * 1024 * 1024,
        ),
        cost_estimate=pl.CostEstimate(
            flops=flops, transcendentals=0, bytes_accessed=bytes_accessed),
    )(*operands)
    return out[:M, :cout]


# ---------------------------------------------------------------------------
# JAX glue: im2col, weight layout, BN folding
# ---------------------------------------------------------------------------
def im2col(x_nhwc, ksize, stride, pad):
    """Returns (patches (N*Ho*Wo, ksize*ksize*C), Ho, Wo)."""
    n, h, w, c = x_nhwc.shape
    xp = jnp.pad(x_nhwc, ((0, 0), (pad, pad), (pad, pad), (0, 0)))
    ho = (h + 2 * pad - ksize) // stride + 1
    wo = (w + 2 * pad - ksize) // stride + 1
    cols = []
    for kh in range(ksize):
        for kw in range(ksize):
            cols.append(
                xp[:, kh:kh + stride * ho:stride, kw:kw + stride * wo:stride, :]
            )
    patches = jnp.concatenate(cols, axis=-1)  # (N, Ho, Wo, k*k*C)
    return patches.reshape(n * ho * wo, ksize * ksize * c), ho, wo


def conv_w_to_matmul(w_oihw):
    """PyTorch OIHW -> (kh*kw*Cin, Cout) matching im2col ordering (kh, kw, cin)."""
    o, i, kh, kw = w_oihw.shape
    return jnp.transpose(w_oihw, (2, 3, 1, 0)).reshape(kh * kw * i, o)


def fold_bn(gamma, beta, mean, var, eps=1e-5):
    scale = gamma / jnp.sqrt(var + eps)
    shift = beta - mean * scale
    return scale.reshape(1, -1), shift.reshape(1, -1)


# ---------------------------------------------------------------------------
# BasicBlock forward
# ---------------------------------------------------------------------------
def basic_block_forward(x_nchw, params, stride):
    x = jnp.transpose(x_nchw, (0, 2, 3, 1)).astype(jnp.float32)  # NHWC
    n, h, w, cin = x.shape
    planes = params["conv1_w"].shape[0]

    # conv1 (3x3, stride, pad 1) + bn1 + relu
    p1, ho, wo = im2col(x, 3, stride, 1)
    s1, b1 = fold_bn(params["bn1_gamma"], params["bn1_beta"],
                     params["bn1_mean"], params["bn1_var"])
    w1 = conv_w_to_matmul(params["conv1_w"]) * s1        # BN scale folded into W
    out1 = fused_conv_bn(p1, w1, b1, apply_relu=True)

    # conv2 (3x3, stride 1, pad 1) + bn2 (+ shortcut) + relu, fully fused
    out1_img = out1.reshape(n, ho, wo, planes)
    p2, _, _ = im2col(out1_img, 3, 1, 1)
    s2, b2 = fold_bn(params["bn2_gamma"], params["bn2_beta"],
                     params["bn2_mean"], params["bn2_var"])
    w2 = conv_w_to_matmul(params["conv2_w"]) * s2

    if stride != 1 or cin != planes:
        # downsample shortcut: 1x1 conv + BN, fused into conv2's epilogue;
        # its BN shift folds into conv2's bias.
        ps, _, _ = im2col(x, 1, stride, 0)
        ss, bs = fold_bn(params["sc_gamma"], params["sc_beta"],
                         params["sc_mean"], params["sc_var"])
        ws = conv_w_to_matmul(params["sc_w"]) * ss
        out2 = fused_conv_bn(p2, w2, b2 + bs, sc_patches=ps, sc_w=ws,
                             apply_relu=True)
    else:
        shortcut = x.reshape(n * h * w, cin)             # identity residual
        out2 = fused_conv_bn(p2, w2, b2, residual=shortcut, apply_relu=True)

    out = out2.reshape(n, ho, wo, planes)
    return jnp.transpose(out, (0, 3, 1, 2))  # back to NCHW


# ---------------------------------------------------------------------------
# Deterministic parameter init (synthetic; shapes follow nn.Module __init__)
# ---------------------------------------------------------------------------
def init_params(key, in_planes, planes):
    ks = jax.random.split(key, 12)

    def bn(k0, k1, k2, k3, c):
        return dict(
            gamma=jax.random.uniform(k0, (c,), jnp.float32, 0.5, 1.5),
            beta=jax.random.normal(k1, (c,), jnp.float32) * 0.1,
            mean=jax.random.normal(k2, (c,), jnp.float32) * 0.1,
            var=jax.random.uniform(k3, (c,), jnp.float32, 0.5, 1.5),
        )

    bn1 = bn(ks[2], ks[3], ks[4], ks[5], planes)
    bn2 = bn(ks[6], ks[7], ks[8], ks[9], planes)
    bns = bn(ks[10], ks[11], ks[0], ks[1], planes)

    params = {
        "conv1_w": jax.random.normal(ks[0], (planes, in_planes, 3, 3), jnp.float32) * 0.1,
        "conv2_w": jax.random.normal(ks[1], (planes, planes, 3, 3), jnp.float32) * 0.1,
        "bn1_gamma": bn1["gamma"], "bn1_beta": bn1["beta"],
        "bn1_mean": bn1["mean"], "bn1_var": bn1["var"],
        "bn2_gamma": bn2["gamma"], "bn2_beta": bn2["beta"],
        "bn2_mean": bn2["mean"], "bn2_var": bn2["var"],
        "sc_w": jax.random.normal(ks[2], (planes, in_planes, 1, 1), jnp.float32) * 0.1,
        "sc_gamma": bns["gamma"], "sc_beta": bns["beta"],
        "sc_mean": bns["mean"], "sc_var": bns["var"],
    }
    return params


# ---------------------------------------------------------------------------
# Pure-JAX reference (lax.conv, f32) for correctness check
# ---------------------------------------------------------------------------
def reference_forward(x, params, stride):
    def conv(x, w, s):
        return jax.lax.conv_general_dilated(
            x, w, (s, s),
            padding=[(1, 1), (1, 1)] if w.shape[-1] == 3 else [(0, 0), (0, 0)],
            dimension_numbers=("NCHW", "OIHW", "NCHW"))

    def bn(x, g, b, m, v, eps=1e-5):
        g, b, m, v = (t.reshape(1, -1, 1, 1) for t in (g, b, m, v))
        return (x - m) / jnp.sqrt(v + eps) * g + b

    out = jax.nn.relu(bn(conv(x, params["conv1_w"], stride),
                         params["bn1_gamma"], params["bn1_beta"],
                         params["bn1_mean"], params["bn1_var"]))
    out = bn(conv(out, params["conv2_w"], 1),
             params["bn2_gamma"], params["bn2_beta"],
             params["bn2_mean"], params["bn2_var"])
    in_planes, planes = x.shape[1], params["conv1_w"].shape[0]
    if stride != 1 or in_planes != planes:
        sc = bn(conv(x, params["sc_w"], stride),
                params["sc_gamma"], params["sc_beta"],
                params["sc_mean"], params["sc_var"])
    else:
        sc = x
    return jax.nn.relu(out + sc)


if __name__ == "__main__":
    key = jax.random.PRNGKey(0)

    # Config A: downsample block (stride=2 + channel change) -> fused 1x1
    # shortcut-conv path.  Config B: identity-shortcut (residual) path.
    configs = [
        (2, 4, 16, 16, 8, 2),
        (2, 8, 16, 16, 8, 1),
    ]
    for cfg_i, (N, in_planes, H, W, planes, stride) in enumerate(configs):
        k_x, k_p = jax.random.split(jax.random.fold_in(key, cfg_i))
        x = jax.random.normal(k_x, (N, in_planes, H, W), jnp.float32)
        params = init_params(k_p, in_planes, planes)

        fwd = jax.jit(functools.partial(basic_block_forward, stride=stride))
        out = jax.block_until_ready(fwd(x, params))
        ref = reference_forward(x, params, stride)

        assert out.shape == ref.shape == (N, planes, H // stride, W // stride)
        # bf16 MXU inputs (f32 accumulation + f32 epilogue) -> tolerance is
        # looser than a pure-f32 comparison would allow.
        err = float(jnp.max(jnp.abs(out - ref)))
        assert jnp.allclose(out, ref, atol=5e-2, rtol=5e-2), (cfg_i, err)

    print("KERNEL_OK")
</pallas_src>

<mosaic_0001>
module attributes {stable_mosaic.version = 11 : i64} {
  func.func @_mm_bias_kernel(%arg0: i32, %arg1: i32, %arg2: i32, %arg3: memref<128x128xbf16, #tpu.memory_space<vmem>>, %arg4: memref<128x128xbf16, #tpu.memory_space<vmem>>, %arg5: memref<1x128xf32, #tpu.memory_space<vmem>>, %arg6: memref<128x128xf32, #tpu.memory_space<vmem>>, %arg7: memref<128x128xf32, #tpu.memory_space<vmem>>) attributes {dimension_semantics = [#tpu.dimension_semantics<parallel>, #tpu.dimension_semantics<parallel>, #tpu.dimension_semantics<arbitrary>], iteration_bounds = array<i64: 1, 1, 1>, scalar_prefetch = 0 : i64, scratch_operands = 1 : i64, tpu.core_type = #tpu.core_type<tc>, window_params = [{transform_indices = @transform_0, window_bounds = array<i64: 128, 128>}, {transform_indices = @transform_1, window_bounds = array<i64: 128, 128>}, {transform_indices = @transform_2, window_bounds = array<i64: 1, 128>}, {transform_indices = @transform_3, window_bounds = array<i64: 128, 128>}]} {
    %c0_i32 = arith.constant 0 : i32
    %0 = arith.cmpi eq, %arg2, %c0_i32 : i32
    %1 = arith.extui %0 : i1 to i32
    %c0_i32_0 = arith.constant 0 : i32
    %2 = arith.cmpi ne, %1, %c0_i32_0 : i32
    scf.if %2 {
      %cst_10 = arith.constant 0.000000e+00 : f32
      %12 = vector.broadcast %cst_10 : f32 to vector<128x128xf32>
      %c0_11 = arith.constant 0 : index
      %c0_12 = arith.constant 0 : index
      %13 = vector.load %arg7[%c0_11, %c0_12] : memref<128x128xf32, #tpu.memory_space<vmem>>, vector<128x128xf32>
      tpu.vector_store %arg7[%c0_11, %c0_12], %12 {strides = array<i32>} : memref<128x128xf32, #tpu.memory_space<vmem>>, vector<128x128xf32>,
    } else {
    }
    %c0 = arith.constant 0 : index
    %c0_1 = arith.constant 0 : index
    %3 = vector.load %arg7[%c0, %c0_1] : memref<128x128xf32, #tpu.memory_space<vmem>>, vector<128x128xf32>
    %c0_2 = arith.constant 0 : index
    %c0_3 = arith.constant 0 : index
    %4 = vector.load %arg3[%c0_2, %c0_3] : memref<128x128xbf16, #tpu.memory_space<vmem>>, vector<128x128xbf16>
    %c0_4 = arith.constant 0 : index
    %c0_5 = arith.constant 0 : index
    %5 = vector.load %arg4[%c0_4, %c0_5] : memref<128x128xbf16, #tpu.memory_space<vmem>>, vector<128x128xbf16>
    %cst = arith.constant dense<0.000000e+00> : vector<128x128xf32>
    %6 = tpu.matmul %4, %5, %cst {dimension_numbers = #tpu.dot_dimension_numbers<[1], [0], [0], [1], [0, 0, 1, 1], [], []>} : vector<128x128xbf16>, vector<128x128xbf16>, vector<128x128xf32> -> vector<128x128xf32>
    %7 = arith.addf %3, %6 : vector<128x128xf32>
    %c0_6 = arith.constant 0 : index
    %c0_7 = arith.constant 0 : index
    %8 = vector.load %arg7[%c0_6, %c0_7] : memref<128x128xf32, #tpu.memory_space<vmem>>, vector<128x128xf32>
    tpu.vector_store %arg7[%c0_6, %c0_7], %7 {strides = array<i32>} : memref<128x128xf32, #tpu.memory_space<vmem>>, vector<128x128xf32>,
    %c0_i32_8 = arith.constant 0 : i32
    %9 = arith.cmpi eq, %arg2, %c0_i32_8 : i32
    %10 = arith.extui %9 : i1 to i32
    %c0_i32_9 = arith.constant 0 : i32
    %11 = arith.cmpi ne, %10, %c0_i32_9 : i32
    scf.if %11 {
      %c0_10 = arith.constant 0 : index
      %c0_11 = arith.constant 0 : index
      %12 = vector.load %arg7[%c0_10, %c0_11] : memref<128x128xf32, #tpu.memory_space<vmem>>, vector<128x128xf32>
      %c0_12 = arith.constant 0 : index
      %c0_13 = arith.constant 0 : index
      %13 = vector.load %arg5[%c0_12, %c0_13] : memref<1x128xf32, #tpu.memory_space<vmem>>, vector<1x128xf32>
      %14 = vector.broadcast %13 : vector<1x128xf32> to vector<128x128xf32>
      %15 = arith.addf %12, %14 : vector<128x128xf32>
      %cst_14 = arith.constant 0.000000e+00 : f32
      %16 = vector.broadcast %cst_14 : f32 to vector<128x128xf32>
      %17 = arith.maximumf %15, %16 : vector<128x128xf32>
      %c0_15 = arith.constant 0 : index
      %c0_16 = arith.constant 0 : index
      %18 = vector.load %arg6[%c0_15, %c0_16] : memref<128x128xf32, #tpu.memory_space<vmem>>, vector<128x128xf32>
      tpu.vector_store %arg6[%c0_15, %c0_16], %17 {strides = array<i32>} : memref<128x128xf32, #tpu.memory_space<vmem>>, vector<128x128xf32>,
    } else {
    }
    return
  }
  func.func @transform_0(%arg0: i32, %arg1: i32, %arg2: i32) -> (i32, i32) {
    %c0_i32 = arith.constant 0 : i32
    return %arg0, %arg2 : i32, i32
  }
  func.func @transform_1(%arg0: i32, %arg1: i32, %arg2: i32) -> (i32, i32) {
    %c0_i32 = arith.constant 0 : i32
    return %arg2, %arg1 : i32, i32
  }
  func.func @transform_2(%arg0: i32, %arg1: i32, %arg2: i32) -> (i32, i32) {
    %c0_i32 = arith.constant 0 : i32
    %c0_i32_0 = arith.constant 0 : i32
    return %c0_i32, %arg1 : i32, i32
  }
  func.func @transform_3(%arg0: i32, %arg1: i32, %arg2: i32) -> (i32, i32) {
    %c0_i32 = arith.constant 0 : i32
    return %arg0, %arg1 : i32, i32
  }
}

module attributes {stable_mosaic.version = 11 : i64} {
  func.func @_mm_bias_sc_kernel(%arg0: i32, %arg1: i32, %arg2: i32, %arg3: memref<128x128xbf16, #tpu.memory_space<vmem>>, %arg4: memref<128x128xbf16, #tpu.memory_space<vmem>>, %arg5: memref<1x128xf32, #tpu.memory_space<vmem>>, %arg6: memref<128x128xbf16, #tpu.memory_space<vmem>>, %arg7: memref<128x128xbf16, #tpu.memory_space<vmem>>, %arg8: memref<128x128xf32, #tpu.memory_space<vmem>>, %arg9: memref<128x128xf32, #tpu.memory_space<vmem>>) attributes {dimension_semantics = [#tpu.dimension_semantics<parallel>, #tpu.dimension_semantics<parallel>, #tpu.dimension_semantics<arbitrary>], iteration_bounds = array<i64: 1, 1, 1>, scalar_prefetch = 0 : i64, scratch_operands = 1 : i64, tpu.core_type = #tpu.core_type<tc>, window_params = [{transform_indices = @transform_0, window_bounds = array<i64: 128, 128>}, {transform_indices = @transform_1, window_bounds = array<i64: 128, 128>}, {transform_indices = @transform_2, window_bounds = array<i64: 1, 128>}, {transform_indices = @transform_3, window_bounds = array<i64: 128, 128>}, {transform_indices = @transform_4, window_bounds = array<i64: 128, 128>}, {transform_indices = @transform_5, window_bounds = array<i64: 128, 128>}]} {
    %c0_i32 = arith.constant 0 : i32
    %0 = arith.cmpi eq, %arg2, %c0_i32 : i32
    %1 = arith.extui %0 : i1 to i32
    %c0_i32_0 = arith.constant 0 : i32
    %2 = arith.cmpi ne, %1, %c0_i32_0 : i32
    scf.if %2 {
      %cst_10 = arith.constant 0.000000e+00 : f32
      %12 = vector.broadcast %cst_10 : f32 to vector<128x128xf32>
      %c0_11 = arith.constant 0 : index
      %c0_12 = arith.constant 0 : index
      %13 = vector.load %arg9[%c0_11, %c0_12] : memref<128x128xf32, #tpu.memory_space<vmem>>, vector<128x128xf32>
      tpu.vector_store %arg9[%c0_11, %c0_12], %12 {strides = array<i32>} : memref<128x128xf32, #tpu.memory_space<vmem>>, vector<128x128xf32>,
    } else {
    }
    %c0 = arith.constant 0 : index
    %c0_1 = arith.constant 0 : index
    %3 = vector.load %arg9[%c0, %c0_1] : memref<128x128xf32, #tpu.memory_space<vmem>>, vector<128x128xf32>
    %c0_2 = arith.constant 0 : index
    %c0_3 = arith.constant 0 : index
    %4 = vector.load %arg3[%c0_2, %c0_3] : memref<128x128xbf16, #tpu.memory_space<vmem>>, vector<128x128xbf16>
    %c0_4 = arith.constant 0 : index
    %c0_5 = arith.constant 0 : index
    %5 = vector.load %arg4[%c0_4, %c0_5] : memref<128x128xbf16, #tpu.memory_space<vmem>>, vector<128x128xbf16>
    %cst = arith.constant dense<0.000000e+00> : vector<128x128xf32>
    %6 = tpu.matmul %4, %5, %cst {dimension_numbers = #tpu.dot_dimension_numbers<[1], [0], [0], [1], [0, 0, 1, 1], [], []>} : vector<128x128xbf16>, vector<128x128xbf16>, vector<128x128xf32> -> vector<128x128xf32>
    %7 = arith.addf %3, %6 : vector<128x128xf32>
    %c0_6 = arith.constant 0 : index
    %c0_7 = arith.constant 0 : index
    %8 = vector.load %arg9[%c0_6, %c0_7] : memref<128x128xf32, #tpu.memory_space<vmem>>, vector<128x128xf32>
    tpu.vector_store %arg9[%c0_6, %c0_7], %7 {strides = array<i32>} : memref<128x128xf32, #tpu.memory_space<vmem>>, vector<128x128xf32>,
    %c0_i32_8 = arith.constant 0 : i32
    %9 = arith.cmpi eq, %arg2, %c0_i32_8 : i32
    %10 = arith.extui %9 : i1 to i32
    %c0_i32_9 = arith.constant 0 : i32
    %11 = arith.cmpi ne, %10, %c0_i32_9 : i32
    scf.if %11 {
      %c0_10 = arith.constant 0 : index
      %c0_11 = arith.constant 0 : index
      %12 = vector.load %arg6[%c0_10, %c0_11] : memref<128x128xbf16, #tpu.memory_space<vmem>>, vector<128x128xbf16>
      %c0_12 = arith.constant 0 : index
      %c0_13 = arith.constant 0 : index
      %13 = vector.load %arg7[%c0_12, %c0_13] : memref<128x128xbf16, #tpu.memory_space<vmem>>, vector<128x128xbf16>
      %cst_14 = arith.constant dense<0.000000e+00> : vector<128x128xf32>
      %14 = tpu.matmul %12, %13, %cst_14 {dimension_numbers = #tpu.dot_dimension_numbers<[1], [0], [0], [1], [0, 0, 1, 1], [], []>} : vector<128x128xbf16>, vector<128x128xbf16>, vector<128x128xf32> -> vector<128x128xf32>
      %c0_15 = arith.constant 0 : index
      %c0_16 = arith.constant 0 : index
      %15 = vector.load %arg9[%c0_15, %c0_16] : memref<128x128xf32, #tpu.memory_space<vmem>>, vector<128x128xf32>
      %c0_17 = arith.constant 0 : index
      %c0_18 = arith.constant 0 : index
      %16 = vector.load %arg5[%c0_17, %c0_18] : memref<1x128xf32, #tpu.memory_space<vmem>>, vector<1x128xf32>
      %17 = vector.broadcast %16 : vector<1x128xf32> to vector<128x128xf32>
      %18 = arith.addf %15, %17 : vector<128x128xf32>
      %19 = arith.addf %18, %14 : vector<128x128xf32>
      %cst_19 = arith.constant 0.000000e+00 : f32
      %20 = vector.broadcast %cst_19 : f32 to vector<128x128xf32>
      %21 = arith.maximumf %19, %20 : vector<128x128xf32>
      %c0_20 = arith.constant 0 : index
      %c0_21 = arith.constant 0 : index
      %22 = vector.load %arg8[%c0_20, %c0_21] : memref<128x128xf32, #tpu.memory_space<vmem>>, vector<128x128xf32>
      tpu.vector_store %arg8[%c0_20, %c0_21], %21 {strides = array<i32>} : memref<128x128xf32, #tpu.memory_space<vmem>>, vector<128x128xf32>,
    } else {
    }
    return
  }
  func.func @transform_0(%arg0: i32, %arg1: i32, %arg2: i32) -> (i32, i32) {
    %c0_i32 = arith.constant 0 : i32
    return %arg0, %arg2 : i32, i32
  }
  func.func @transform_1(%arg0: i32, %arg1: i32, %arg2: i32) -> (i32, i32) {
    %c0_i32 = arith.constant 0 : i32
    return %arg2, %arg1 : i32, i32
  }
  func.func @transform_2(%arg0: i32, %arg1: i32, %arg2: i32) -> (i32, i32) {
    %c0_i32 = arith.constant 0 : i32
    %c0_i32_0 = arith.constant 0 : i32
    return %c0_i32, %arg1 : i32, i32
  }
  func.func @transform_3(%arg0: i32, %arg1: i32, %arg2: i32) -> (i32, i32) {
    %c0_i32 = arith.constant 0 : i32
    %c0_i32_0 = arith.constant 0 : i32
    return %arg0, %c0_i32 : i32, i32
  }
  func.func @transform_4(%arg0: i32, %arg1: i32, %arg2: i32) -> (i32, i32) {
    %c0_i32 = arith.constant 0 : i32
    %c0_i32_0 = arith.constant 0 : i32
    return %c0_i32, %arg1 : i32, i32
  }
  func.func @transform_5(%arg0: i32, %arg1: i32, %arg2: i32) -> (i32, i32) {
    %c0_i32 = arith.constant 0 : i32
    return %arg0, %arg1 : i32, i32
  }
}

</mosaic_0001>

<llo_original>
// kernel: basic_block_forward.2
$region0: #{basic_block_forward.2}
  #allocation0 [shape = 'u32[]', space=smem, size = 0x4, offset = 0x4, fixed_abs, tag = 'smem constant byte address 0x4 - core index']
  #allocation1 [shape = 'u32[144,128]{1,0:T(1,128)}', space=vmem, size = 0x12000, scoped, tag = 'internal scratch']
  #allocation2 [shape = 'f32[128,128]{1,0:T(8,128)}', space=vmem, size = 0x10000, scoped, tag = 'scratch operand']
  %s0 = inlined_call_operand.vmem [shape: bf16[128,128], index: 0, kind: input, shape index: {}]
  %s1 = inlined_call_operand.vmem [shape: bf16[128,128], index: 1, kind: input, shape index: {}]
  %s2 = inlined_call_operand.vmem [shape: f32[1,128], index: 2, kind: input, shape index: {}]
  %s3 = inlined_call_operand.vmem [shape: f32[128,128], index: 3, kind: output, shape index: {}]
  %s4 = sld [smem:[#allocation0]]
  $region30: #{basic_block_forward.2} parent=0
    _
  %s6 = ssub.s32 1, %s4
  %s7 = scalar_select 0, %s6, %s4
  // Predicated region
  $region2: #{basic_block_forward.2} parent=0 // pred_check
    _
  $region3: #{basic_block_forward.2} parent=0 // pred_check_branch
    %9 = sbr.rel (0) target = $region5
  $region4: #{basic_block_forward.2} parent=0 // pred_region
    _
  $region5: #{basic_block_forward.2} parent=0 // pred_fallthru
    _
  // Predicated region
  $region6: #{basic_block_forward.2} parent=0 // pred_check
    _
  $region7: #{basic_block_forward.2} parent=0 // pred_check_branch
    %11 = sbr.rel (0) target = $region9
  $region8: #{basic_block_forward.2} parent=0 // pred_region
    _
  $region9: #{basic_block_forward.2} parent=0 // pred_fallthru
    _
  // Predicated region
  $region10: #{basic_block_forward.2} parent=0 // pred_check
    _
  $region11: #{basic_block_forward.2} parent=0 // pred_check_branch
    %13 = sbr.rel (0) target = $region13
  $region12: #{basic_block_forward.2} parent=0 // pred_region
    _
  $region13: #{basic_block_forward.2} parent=0 // pred_fallthru
    _
  %p15 = scmp.eq.s32.totalorder 0, 0
  // Predicated region
  $region14: #{basic_block_forward.2} parent=0 // pred_check
    %p16 = pneg %p15
  $region15: #{basic_block_forward.2} parent=0 // pred_check_branch
    %18 = sbr.rel (%p16) target = $region17
  $region16: #{basic_block_forward.2} parent=0 // pred_region
    %19 = vst [vmem:[#allocation2] sm:$0xff] 0.0
    %20 = vst [vmem:[#allocation2 + $0x8] sm:$0xff] 0.0
    %21 = vst [vmem:[#allocation2 + $0x10] sm:$0xff] 0.0
    %22 = vst [vmem:[#allocation2 + $0x18] sm:$0xff] 0.0
    %23 = vst [vmem:[#allocation2 + $0x20] sm:$0xff] 0.0
    %24 = vst [vmem:[#allocation2 + $0x28] sm:$0xff] 0.0
    %25 = vst [vmem:[#allocation2 + $0x30] sm:$0xff] 0.0
    %26 = vst [vmem:[#allocation2 + $0x38] sm:$0xff] 0.0
    %27 = vst [vmem:[#allocation2 + $0x40] sm:$0xff] 0.0
    %28 = vst [vmem:[#allocation2 + $0x48] sm:$0xff] 0.0
    %29 = vst [vmem:[#allocation2 + $0x50] sm:$0xff] 0.0
    %30 = vst [vmem:[#allocation2 + $0x58] sm:$0xff] 0.0
    %31 = vst [vmem:[#allocation2 + $0x60] sm:$0xff] 0.0
    %32 = vst [vmem:[#allocation2 + $0x68] sm:$0xff] 0.0
    %33 = vst [vmem:[#allocation2 + $0x70] sm:$0xff] 0.0
    %34 = vst [vmem:[#allocation2 + $0x78] sm:$0xff] 0.0
  $region17: #{basic_block_forward.2} parent=0 // pred_fallthru
    _
  %v35 = vld [vmem:[#allocation2] sm:$0xff]
  %v36 = vld [vmem:[#allocation2 + $0x8] sm:$0xff]
  %v37 = vld [vmem:[#allocation2 + $0x10] sm:$0xff]
  %v38 = vld [vmem:[#allocation2 + $0x18] sm:$0xff]
  %v39 = vld [vmem:[#allocation2 + $0x20] sm:$0xff]
  %v40 = vld [vmem:[#allocation2 + $0x28] sm:$0xff]
  %v41 = vld [vmem:[#allocation2 + $0x30] sm:$0xff]
  %v42 = vld [vmem:[#allocation2 + $0x38] sm:$0xff]
  %v43 = vld [vmem:[#allocation2 + $0x40] sm:$0xff]
  %v44 = vld [vmem:[#allocation2 + $0x48] sm:$0xff]
  %v45 = vld [vmem:[#allocation2 + $0x50] sm:$0xff]
  %v46 = vld [vmem:[#allocation2 + $0x58] sm:$0xff]
  %v47 = vld [vmem:[#allocation2 + $0x60] sm:$0xff]
  %v48 = vld [vmem:[#allocation2 + $0x68] sm:$0xff]
  %v49 = vld [vmem:[#allocation2 + $0x70] sm:$0xff]
  %v50 = vld [vmem:[#allocation2 + $0x78] sm:$0xff]
  %v51 = vld [vmem:[%s0] sm:$0xf]
  %v52 = vld [vmem:[%s0 + $0x4] sm:$0xf]
  %v53 = vld [vmem:[%s0 + $0x8] sm:$0xf]
  %v54 = vld [vmem:[%s0 + $0xc] sm:$0xf]
  %v55 = vld [vmem:[%s0 + $0x10] sm:$0xf]
  %v56 = vld [vmem:[%s0 + $0x14] sm:$0xf]
  %v57 = vld [vmem:[%s0 + $0x18] sm:$0xf]
  %v58 = vld [vmem:[%s0 + $0x1c] sm:$0xf]
  %v59 = vld [vmem:[%s0 + $0x20] sm:$0xf]
  %v60 = vld [vmem:[%s0 + $0x24] sm:$0xf]
  %v61 = vld [vmem:[%s0 + $0x28] sm:$0xf]
  %v62 = vld [vmem:[%s0 + $0x2c] sm:$0xf]
  %v63 = vld [vmem:[%s0 + $0x30] sm:$0xf]
  %v64 = vld [vmem:[%s0 + $0x34] sm:$0xf]
  %v65 = vld [vmem:[%s0 + $0x38] sm:$0xf]
  %v66 = vld [vmem:[%s0 + $0x3c] sm:$0xf]
  %v67 = vld [vmem:[%s1] sm:$0xf]
  %v68 = vld [vmem:[%s1 + $0x4] sm:$0xf]
  %v69 = vld [vmem:[%s1 + $0x8] sm:$0xf]
  %v70 = vld [vmem:[%s1 + $0xc] sm:$0xf]
  %v71 = vld [vmem:[%s1 + $0x10] sm:$0xf]
  %v72 = vld [vmem:[%s1 + $0x14] sm:$0xf]
  %v73 = vld [vmem:[%s1 + $0x18] sm:$0xf]
  %v74 = vld [vmem:[%s1 + $0x1c] sm:$0xf]
  %v75 = vld [vmem:[%s1 + $0x20] sm:$0xf]
  %v76 = vld [vmem:[%s1 + $0x24] sm:$0xf]
  %v77 = vld [vmem:[%s1 + $0x28] sm:$0xf]
  %v78 = vld [vmem:[%s1 + $0x2c] sm:$0xf]
  %v79 = vld [vmem:[%s1 + $0x30] sm:$0xf]
  %v80 = vld [vmem:[%s1 + $0x34] sm:$0xf]
  %v81 = vld [vmem:[%s1 + $0x38] sm:$0xf]
  %v82 = vld [vmem:[%s1 + $0x3c] sm:$0xf]
  %v99 = vunpack.c.l.b16 %v51
  %v100 = vunpack.c.l.b16 %v52
  %v101 = vunpack.c.l.b16 %v53
  %v102 = vunpack.c.l.b16 %v54
  %v103 = vunpack.c.l.b16 %v55
  %v104 = vunpack.c.l.b16 %v56
  %v105 = vunpack.c.l.b16 %v57
  %v106 = vunpack.c.l.b16 %v58
  %v107 = vunpack.c.l.b16 %v59
  %v108 = vunpack.c.l.b16 %v60
  %v109 = vunpack.c.l.b16 %v61
  %v110 = vunpack.c.l.b16 %v62
  %v111 = vunpack.c.l.b16 %v63
  %v112 = vunpack.c.l.b16 %v64
  %v113 = vunpack.c.l.b16 %v65
  %v114 = vunpack.c.l.b16 %v66
  %v115 = vpack.c.b16 %v100, %v99
  %v116 = vpack.c.b16 %v102, %v101
  %v117 = vpack.c.b16 %v104, %v103
  %v118 = vpack.c.b16 %v106, %v105
  %v119 = vpack.c.b16 %v108, %v107
  %v120 = vpack.c.b16 %v110, %v109
  %v121 = vpack.c.b16 %v112, %v111
  %v122 = vpack.c.b16 %v114, %v113
  %v147 = vunpack.c.l.b16 %v67
  %v148 = vunpack.c.l.b16 %v68
  %v149 = vunpack.c.l.b16 %v69
  %v150 = vunpack.c.l.b16 %v70
  %v151 = vunpack.c.l.b16 %v71
  %v152 = vunpack.c.l.b16 %v72
  %v153 = vunpack.c.l.b16 %v73
  %v154 = vunpack.c.l.b16 %v74
  %v155 = vunpack.c.l.b16 %v75
  %v156 = vunpack.c.l.b16 %v76
  %v157 = vunpack.c.l.b16 %v77
  %v158 = vunpack.c.l.b16 %v78
  %v159 = vunpack.c.l.b16 %v79
  %v160 = vunpack.c.l.b16 %v80
  %v161 = vunpack.c.l.b16 %v81
  %v162 = vunpack.c.l.b16 %v82
  %v163 = vpack.c.b16 %v148, %v147
  %v164 = vpack.c.b16 %v150, %v149
  %v165 = vpack.c.b16 %v152, %v151
  %v166 = vpack.c.b16 %v154, %v153
  %v167 = vpack.c.b16 %v156, %v155
  %v168 = vpack.c.b16 %v158, %v157
  %v169 = vpack.c.b16 %v160, %v159
  %v170 = vpack.c.b16 %v162, %v161
  %179 = vmatprep.subr.bf16.mxu0 0
  %180 = vmatpush1.bf16.msra.mxu0 %v170
  %181 = vmatprep.subr.bf16.mxu0 0
  %182 = vmatpush1.bf16.msra.mxu0 %v169
  %183 = vmatprep.subr.bf16.mxu0 0
  %184 = vmatpush1.bf16.msra.mxu0 %v168
  %185 = vmatprep.subr.bf16.mxu0 0
  %186 = vmatpush1.bf16.msra.mxu0 %v167
  %187 = vmatprep.subr.bf16.mxu0 0
  %188 = vmatpush1.bf16.msra.mxu0 %v166
  %189 = vmatprep.subr.bf16.mxu0 0
  %190 = vmatpush1.bf16.msra.mxu0 %v165
  %191 = vmatprep.subr.bf16.mxu0 0
  %192 = vmatpush1.bf16.msra.mxu0 %v164
  %193 = vmatprep.subr.bf16.mxu0 0
  %194 = vmatpush1.bf16.msra.mxu0 %v163
  %195 = vmatprep.subr.bf16.mxu0 0
  %196 = vmatpush2.bf16.msra.mxu0 0
  %197 = vmatprep.subr.bf16.mxu0 0
  %198 = vmatpush2.bf16.msra.mxu0 0
  %199 = vmatprep.subr.bf16.mxu0 0
  %200 = vmatpush2.bf16.msra.mxu0 0
  %201 = vmatprep.subr.bf16.mxu0 0
  %202 = vmatpush2.bf16.msra.mxu0 0
  %203 = vmatprep.subr.bf16.mxu0 0
  %204 = vmatpush2.bf16.msra.mxu0 0
  %205 = vmatprep.subr.bf16.mxu0 0
  %206 = vmatpush2.bf16.msra.mxu0 0
  %207 = vmatprep.subr.bf16.mxu0 0
  %208 = vmatpush2.bf16.msra.mxu0 0
  %209 = vmatprep.subr.bf16.mxu0 0
  %210 = vmatpush2.bf16.msra.mxu0 0
  %211 = vmatprep.mubr.bf16.mxu0 0
  %212 = vmatmul.mubr.bf16.gmra.mxu0 %v115
  %v213 = vpop.f32.mrf.mxu0
  %v214 = vadd.f32 0.0, %v213
  %v215 = vpop.f32.mrf.mxu0
  %v216 = vpop.f32.mrf.mxu0
  %v217 = vadd.f32 0.0, %v216
  %v218 = vpop.f32.mrf.mxu0
  %219 = vmatprep.mubr.bf16.mxu0 0
  %220 = vmatmul.mubr.bf16.gmra.mxu0 %v116
  %v221 = vpop.f32.mrf.mxu0
  %v222 = vadd.f32 0.0, %v221
  %v223 = vpop.f32.mrf.mxu0
  %v224 = vpop.f32.mrf.mxu0
  %v225 = vadd.f32 0.0, %v224
  %v226 = vpop.f32.mrf.mxu0
  %227 = vmatprep.mubr.bf16.mxu0 0
  %228 = vmatmul.mubr.bf16.gmra.mxu0 %v117
  %v229 = vpop.f32.mrf.mxu0
  %v230 = vadd.f32 0.0, %v229
  %v231 = vpop.f32.mrf.mxu0
  %v232 = vpop.f32.mrf.mxu0
  %v233 = vadd.f32 0.0, %v232
  %v234 = vpop.f32.mrf.mxu0
  %235 = vmatprep.mubr.bf16.mxu0 0
  %236 = vmatmul.mubr.bf16.gmra.mxu0 %v118
  %v237 = vpop.f32.mrf.mxu0
  %v238 = vadd.f32 0.0, %v237
  %v239 = vpop.f32.mrf.mxu0
  %v240 = vpop.f32.mrf.mxu0
  %v241 = vadd.f32 0.0, %v240
  %v242 = vpop.f32.mrf.mxu0
  %243 = vmatprep.mubr.bf16.mxu0 0
  %244 = vmatmul.mubr.bf16.gmra.mxu0 %v119
  %v245 = vpop.f32.mrf.mxu0
  %v246 = vadd.f32 0.0, %v245
  %v247 = vpop.f32.mrf.mxu0
  %v248 = vpop.f32.mrf.mxu0
  %v249 = vadd.f32 0.0, %v248
  %v250 = vpop.f32.mrf.mxu0
  %251 = vmatprep.mubr.bf16.mxu0 0
  %252 = vmatmul.mubr.bf16.gmra.mxu0 %v120
  %v253 = vpop.f32.mrf.mxu0
  %v254 = vadd.f32 0.0, %v253
  %v255 = vpop.f32.mrf.mxu0
  %v256 = vpop.f32.mrf.mxu0
  %v257 = vadd.f32 0.0, %v256
  %v258 = vpop.f32.mrf.mxu0
  %259 = vmatprep.mubr.bf16.mxu0 0
  %260 = vmatmul.mubr.bf16.gmra.mxu0 %v121
  %v261 = vpop.f32.mrf.mxu0
  %v262 = vadd.f32 0.0, %v261
  %v263 = vpop.f32.mrf.mxu0
  %v264 = vpop.f32.mrf.mxu0
  %v265 = vadd.f32 0.0, %v264
  %v266 = vpop.f32.mrf.mxu0
  %267 = vmatprep.mubr.bf16.mxu0 0
  %268 = vmatmul.mubr.bf16.gmra.mxu0 %v122
  %v269 = vpop.f32.mrf.mxu0
  %v270 = vadd.f32 0.0, %v269
  %v271 = vpop.f32.mrf.mxu0
  %v272 = vpop.f32.mrf.mxu0
  %v273 = vadd.f32 0.0, %v272
  %v274 = vpop.f32.mrf.mxu0
  %275 = vdwg.mxu0
  %v276 = vadd.f32 %v35, %v214
  %v277 = vadd.f32 %v36, %v217
  %v278 = vadd.f32 %v37, %v222
  %v279 = vadd.f32 %v38, %v225
  %v280 = vadd.f32 %v39, %v230
  %v281 = vadd.f32 %v40, %v233
  %v282 = vadd.f32 %v41, %v238
  %v283 = vadd.f32 %v42, %v241
  %v284 = vadd.f32 %v43, %v246
  %v285 = vadd.f32 %v44, %v249
  %v286 = vadd.f32 %v45, %v254
  %v287 = vadd.f32 %v46, %v257
  %v288 = vadd.f32 %v47, %v262
  %v289 = vadd.f32 %v48, %v265
  %v290 = vadd.f32 %v49, %v270
  %v291 = vadd.f32 %v50, %v273
  %292 = vst [vmem:[#allocation2] sm:$0xff] %v276
  %293 = vst [vmem:[#allocation2 + $0x8] sm:$0xff] %v277
  %294 = vst [vmem:[#allocation2 + $0x10] sm:$0xff] %v278
  %295 = vst [vmem:[#allocation2 + $0x18] sm:$0xff] %v279
  %296 = vst [vmem:[#allocation2 + $0x20] sm:$0xff] %v280
  %297 = vst [vmem:[#allocation2 + $0x28] sm:$0xff] %v281
  %298 = vst [vmem:[#allocation2 + $0x30] sm:$0xff] %v282
  %299 = vst [vmem:[#allocation2 + $0x38] sm:$0xff] %v283
  %300 = vst [vmem:[#allocation2 + $0x40] sm:$0xff] %v284
  %301 = vst [vmem:[#allocation2 + $0x48] sm:$0xff] %v285
  %302 = vst [vmem:[#allocation2 + $0x50] sm:$0xff] %v286
  %303 = vst [vmem:[#allocation2 + $0x58] sm:$0xff] %v287
  %304 = vst [vmem:[#allocation2 + $0x60] sm:$0xff] %v288
  %305 = vst [vmem:[#allocation2 + $0x68] sm:$0xff] %v289
  %306 = vst [vmem:[#allocation2 + $0x70] sm:$0xff] %v290
  %307 = vst [vmem:[#allocation2 + $0x78] sm:$0xff] %v291
  // Predicated region
  $region18: #{basic_block_forward.2} parent=0 // pred_check
    %p308 = pneg %p15
  $region19: #{basic_block_forward.2} parent=0 // pred_check_branch
    %310 = sbr.rel (%p308) target = $region21
  $region20: #{basic_block_forward.2} parent=0 // pred_region
    %v311 = vld [vmem:[#allocation2] sm:$0xff]
    %v312 = vld [vmem:[#allocation2 + $0x8] sm:$0xff]
    %v313 = vld [vmem:[#allocation2 + $0x10] sm:$0xff]
    %v314 = vld [vmem:[#allocation2 + $0x18] sm:$0xff]
    %v315 = vld [vmem:[#allocation2 + $0x20] sm:$0xff]
    %v316 = vld [vmem:[#allocation2 + $0x28] sm:$0xff]
    %v317 = vld [vmem:[#allocation2 + $0x30] sm:$0xff]
    %v318 = vld [vmem:[#allocation2 + $0x38] sm:$0xff]
    %v319 = vld [vmem:[#allocation2 + $0x40] sm:$0xff]
    %v320 = vld [vmem:[#allocation2 + $0x48] sm:$0xff]
    %v321 = vld [vmem:[#allocation2 + $0x50] sm:$0xff]
    %v322 = vld [vmem:[#allocation2 + $0x58] sm:$0xff]
    %v323 = vld [vmem:[#allocation2 + $0x60] sm:$0xff]
    %v324 = vld [vmem:[#allocation2 + $0x68] sm:$0xff]
    %v325 = vld [vmem:[#allocation2 + $0x70] sm:$0xff]
    %v326 = vld [vmem:[#allocation2 + $0x78] sm:$0xff]
    %v327 = vld [vmem:[%s2] sm:$0x1]
    %v329 = vlaneseq
    %v330 = vshrl.u32 %v329, 7
    %v331 = vsub.s32 0, %v330
    %v332 = vrot.slane %v327, %v331
    %v334 = vadd.f32 %v311, %v332
    %v335 = vadd.f32 %v312, %v332
    %v336 = vadd.f32 %v313, %v332
    %v337 = vadd.f32 %v314, %v332
    %v338 = vadd.f32 %v315, %v332
    %v339 = vadd.f32 %v316, %v332
    %v340 = vadd.f32 %v317, %v332
    %v341 = vadd.f32 %v318, %v332
    %v342 = vadd.f32 %v319, %v332
    %v343 = vadd.f32 %v320, %v332
    %v344 = vadd.f32 %v321, %v332
    %v345 = vadd.f32 %v322, %v332
    %v346 = vadd.f32 %v323, %v332
    %v347 = vadd.f32 %v324, %v332
    %v348 = vadd.f32 %v325, %v332
    %v349 = vadd.f32 %v326, %v332
    %v350 = vmax.f32 %v334, 0.0
    %v351 = vmax.f32 %v335, 0.0
    %v352 = vmax.f32 %v336, 0.0
    %v353 = vmax.f32 %v337, 0.0
    %v354 = vmax.f32 %v338, 0.0
    %v355 = vmax.f32 %v339, 0.0
    %v356 = vmax.f32 %v340, 0.0
    %v357 = vmax.f32 %v341, 0.0
    %v358 = vmax.f32 %v342, 0.0
    %v359 = vmax.f32 %v343, 0.0
    %v360 = vmax.f32 %v344, 0.0
    %v361 = vmax.f32 %v345, 0.0
    %v362 = vmax.f32 %v346, 0.0
    %v363 = vmax.f32 %v347, 0.0
    %v364 = vmax.f32 %v348, 0.0
    %v365 = vmax.f32 %v349, 0.0
    %366 = vst [vmem:[%s3] sm:$0xff] %v350
    %367 = vst [vmem:[%s3 + $0x8] sm:$0xff] %v351
    %368 = vst [vmem:[%s3 + $0x10] sm:$0xff] %v352
    %369 = vst [vmem:[%s3 + $0x18] sm:$0xff] %v353
    %370 = vst [vmem:[%s3 + $0x20] sm:$0xff] %v354
    %371 = vst [vmem:[%s3 + $0x28] sm:$0xff] %v355
    %372 = vst [vmem:[%s3 + $0x30] sm:$0xff] %v356
    %373 = vst [vmem:[%s3 + $0x38] sm:$0xff] %v357
    %374 = vst [vmem:[%s3 + $0x40] sm:$0xff] %v358
    %375 = vst [vmem:[%s3 + $0x48] sm:$0xff] %v359
    %376 = vst [vmem:[%s3 + $0x50] sm:$0xff] %v360
    %377 = vst [vmem:[%s3 + $0x58] sm:$0xff] %v361
    %378 = vst [vmem:[%s3 + $0x60] sm:$0xff] %v362
    %379 = vst [vmem:[%s3 + $0x68] sm:$0xff] %v363
    %380 = vst [vmem:[%s3 + $0x70] sm:$0xff] %v364
    %381 = vst [vmem:[%s3 + $0x78] sm:$0xff] %v365
  $region21: #{basic_block_forward.2} parent=0 // pred_fallthru
    _
  // Predicated region
  $region22: #{basic_block_forward.2} parent=0 // pred_check
    _
  $region23: #{basic_block_forward.2} parent=0 // pred_check_branch
    %383 = sbr.rel (0) target = $region25
  $region24: #{basic_block_forward.2} parent=0 // pred_region
    _
  $region25: #{basic_block_forward.2} parent=0 // pred_fallthru
    _
  // Predicated region
  $region26: #{basic_block_forward.2} parent=0 // pred_check
    _
  $region27: #{basic_block_forward.2} parent=0 // pred_check_branch
    %385 = sbr.rel (0) target = $region29
  $region28: #{basic_block_forward.2} parent=0 // pred_region
    _
  $region29: #{basic_block_forward.2} parent=0 // pred_fallthru
    _

// kernel: basic_block_forward.3
$region0: #{basic_block_forward.3}
  #allocation0 [shape = 'u32[]', space=smem, size = 0x4, offset = 0x4, fixed_abs, tag = 'smem constant byte address 0x4 - core index']
  #allocation1 [shape = 'u32[144,128]{1,0:T(1,128)}', space=vmem, size = 0x12000, scoped, tag = 'internal scratch']
  #allocation2 [shape = 'f32[128,128]{1,0:T(8,128)}', space=vmem, size = 0x10000, scoped, tag = 'scratch operand']
  %s0 = inlined_call_operand.vmem [shape: bf16[128,128], index: 0, kind: input, shape index: {}]
  %s1 = inlined_call_operand.vmem [shape: bf16[128,128], index: 1, kind: input, shape index: {}]
  %s2 = inlined_call_operand.vmem [shape: f32[1,128], index: 2, kind: input, shape index: {}]
  %s3 = inlined_call_operand.vmem [shape: bf16[128,128], index: 3, kind: input, shape index: {}]
  %s4 = inlined_call_operand.vmem [shape: bf16[128,128], index: 4, kind: input, shape index: {}]
  %s5 = inlined_call_operand.vmem [shape: f32[128,128], index: 5, kind: output, shape index: {}]
  %s6 = sld [smem:[#allocation0]]
  $region38: #{basic_block_forward.3} parent=0
    _
  %s8 = ssub.s32 1, %s6
  %s9 = scalar_select 0, %s8, %s6
  // Predicated region
  $region2: #{basic_block_forward.3} parent=0 // pred_check
    _
  $region3: #{basic_block_forward.3} parent=0 // pred_check_branch
    %11 = sbr.rel (0) target = $region5
  $region4: #{basic_block_forward.3} parent=0 // pred_region
    _
  $region5: #{basic_block_forward.3} parent=0 // pred_fallthru
    _
  // Predicated region
  $region6: #{basic_block_forward.3} parent=0 // pred_check
    _
  $region7: #{basic_block_forward.3} parent=0 // pred_check_branch
    %13 = sbr.rel (0) target = $region9
  $region8: #{basic_block_forward.3} parent=0 // pred_region
    _
  $region9: #{basic_block_forward.3} parent=0 // pred_fallthru
    _
  // Predicated region
  $region10: #{basic_block_forward.3} parent=0 // pred_check
    _
  $region11: #{basic_block_forward.3} parent=0 // pred_check_branch
    %15 = sbr.rel (0) target = $region13
  $region12: #{basic_block_forward.3} parent=0 // pred_region
    _
  $region13: #{basic_block_forward.3} parent=0 // pred_fallthru
    _
  // Predicated region
  $region14: #{basic_block_forward.3} parent=0 // pred_check
    _
  $region15: #{basic_block_forward.3} parent=0 // pred_check_branch
    %17 = sbr.rel (0) target = $region17
  $region16: #{basic_block_forward.3} parent=0 // pred_region
    _
  $region17: #{basic_block_forward.3} parent=0 // pred_fallthru
    _
  // Predicated region
  $region18: #{basic_block_forward.3} parent=0 // pred_check
    _
  $region19: #{basic_block_forward.3} parent=0 // pred_check_branch
    %19 = sbr.rel (0) target = $region21
  $region20: #{basic_block_forward.3} parent=0 // pred_region
    _
  $region21: #{basic_block_forward.3} parent=0 // pred_fallthru
    _
  %p21 = scmp.eq.s32.totalorder 0, 0
  // Predicated region
  $region22: #{basic_block_forward.3} parent=0 // pred_check
    %p22 = pneg %p21
  $region23: #{basic_block_forward.3} parent=0 // pred_check_branch
    %24 = sbr.rel (%p22) target = $region25
  $region24: #{basic_block_forward.3} parent=0 // pred_region
    %25 = vst [vmem:[#allocation2] sm:$0xff] 0.0
    %26 = vst [vmem:[#allocation2 + $0x8] sm:$0xff] 0.0
    %27 = vst [vmem:[#allocation2 + $0x10] sm:$0xff] 0.0
    %28 = vst [vmem:[#allocation2 + $0x18] sm:$0xff] 0.0
    %29 = vst [vmem:[#allocation2 + $0x20] sm:$0xff] 0.0
    %30 = vst [vmem:[#allocation2 + $0x28] sm:$0xff] 0.0
    %31 = vst [vmem:[#allocation2 + $0x30] sm:$0xff] 0.0
    %32 = vst [vmem:[#allocation2 + $0x38] sm:$0xff] 0.0
    %33 = vst [vmem:[#allocation2 + $0x40] sm:$0xff] 0.0
    %34 = vst [vmem:[#allocation2 + $0x48] sm:$0xff] 0.0
    %35 = vst [vmem:[#allocation2 + $0x50] sm:$0xff] 0.0
    %36 = vst [vmem:[#allocation2 + $0x58] sm:$0xff] 0.0
    %37 = vst [vmem:[#allocation2 + $0x60] sm:$0xff] 0.0
    %38 = vst [vmem:[#allocation2 + $0x68] sm:$0xff] 0.0
    %39 = vst [vmem:[#allocation2 + $0x70] sm:$0xff] 0.0
    %40 = vst [vmem:[#allocation2 + $0x78] sm:$0xff] 0.0
  $region25: #{basic_block_forward.3} parent=0 // pred_fallthru
    _
  %v41 = vld [vmem:[#allocation2] sm:$0xff]
  %v42 = vld [vmem:[#allocation2 + $0x8] sm:$0xff]
  %v43 = vld [vmem:[#allocation2 + $0x10] sm:$0xff]
  %v44 = vld [vmem:[#allocation2 + $0x18] sm:$0xff]
  %v45 = vld [vmem:[#allocation2 + $0x20] sm:$0xff]
  %v46 = vld [vmem:[#allocation2 + $0x28] sm:$0xff]
  %v47 = vld [vmem:[#allocation2 + $0x30] sm:$0xff]
  %v48 = vld [vmem:[#allocation2 + $0x38] sm:$0xff]
  %v49 = vld [vmem:[#allocation2 + $0x40] sm:$0xff]
  %v50 = vld [vmem:[#allocation2 + $0x48] sm:$0xff]
  %v51 = vld [vmem:[#allocation2 + $0x50] sm:$0xff]
  %v52 = vld [vmem:[#allocation2 + $0x58] sm:$0xff]
  %v53 = vld [vmem:[#allocation2 + $0x60] sm:$0xff]
  %v54 = vld [vmem:[#allocation2 + $0x68] sm:$0xff]
  %v55 = vld [vmem:[#allocation2 + $0x70] sm:$0xff]
  %v56 = vld [vmem:[#allocation2 + $0x78] sm:$0xff]
  %v57 = vld [vmem:[%s0] sm:$0xf]
  %v58 = vld [vmem:[%s0 + $0x4] sm:$0xf]
  %v59 = vld [vmem:[%s0 + $0x8] sm:$0xf]
  %v60 = vld [vmem:[%s0 + $0xc] sm:$0xf]
  %v61 = vld [vmem:[%s0 + $0x10] sm:$0xf]
  %v62 = vld [vmem:[%s0 + $0x14] sm:$0xf]
  %v63 = vld [vmem:[%s0 + $0x18] sm:$0xf]
  %v64 = vld [vmem:[%s0 + $0x1c] sm:$0xf]
  %v65 = vld [vmem:[%s0 + $0x20] sm:$0xf]
  %v66 = vld [vmem:[%s0 + $0x24] sm:$0xf]
  %v67 = vld [vmem:[%s0 + $0x28] sm:$0xf]
  %v68 = vld [vmem:[%s0 + $0x2c] sm:$0xf]
  %v69 = vld [vmem:[%s0 + $0x30] sm:$0xf]
  %v70 = vld [vmem:[%s0 + $0x34] sm:$0xf]
  %v71 = vld [vmem:[%s0 + $0x38] sm:$0xf]
  %v72 = vld [vmem:[%s0 + $0x3c] sm:$0xf]
  %v73 = vld [vmem:[%s1] sm:$0xf]
  %v74 = vld [vmem:[%s1 + $0x4] sm:$0xf]
  %v75 = vld [vmem:[%s1 + $0x8] sm:$0xf]
  %v76 = vld [vmem:[%s1 + $0xc] sm:$0xf]
  %v77 = vld [vmem:[%s1 + $0x10] sm:$0xf]
  %v78 = vld [vmem:[%s1 + $0x14] sm:$0xf]
  %v79 = vld [vmem:[%s1 + $0x18] sm:$0xf]
  %v80 = vld [vmem:[%s1 + $0x1c] sm:$0xf]
  %v81 = vld [vmem:[%s1 + $0x20] sm:$0xf]
  %v82 = vld [vmem:[%s1 + $0x24] sm:$0xf]
  %v83 = vld [vmem:[%s1 + $0x28] sm:$0xf]
  %v84 = vld [vmem:[%s1 + $0x2c] sm:$0xf]
  %v85 = vld [vmem:[%s1 + $0x30] sm:$0xf]
  %v86 = vld [vmem:[%s1 + $0x34] sm:$0xf]
  %v87 = vld [vmem:[%s1 + $0x38] sm:$0xf]
  %v88 = vld [vmem:[%s1 + $0x3c] sm:$0xf]
  %v105 = vunpack.c.l.b16 %v57
  %v106 = vunpack.c.l.b16 %v58
  %v107 = vunpack.c.l.b16 %v59
  %v108 = vunpack.c.l.b16 %v60
  %v109 = vunpack.c.l.b16 %v61
  %v110 = vunpack.c.l.b16 %v62
  %v111 = vunpack.c.l.b16 %v63
  %v112 = vunpack.c.l.b16 %v64
  %v113 = vunpack.c.l.b16 %v65
  %v114 = vunpack.c.l.b16 %v66
  %v115 = vunpack.c.l.b16 %v67
  %v116 = vunpack.c.l.b16 %v68
  %v117 = vunpack.c.l.b16 %v69
  %v118 = vunpack.c.l.b16 %v70
  %v119 = vunpack.c.l.b16 %v71
  %v120 = vunpack.c.l.b16 %v72
  %v121 = vpack.c.b16 %v106, %v105
  %v122 = vpack.c.b16 %v108, %v107
  %v123 = vpack.c.b16 %v110, %v109
  %v124 = vpack.c.b16 %v112, %v111
  %v125 = vpack.c.b16 %v114, %v113
  %v126 = vpack.c.b16 %v116, %v115
  %v127 = vpack.c.b16 %v118, %v117
  %v128 = vpack.c.b16 %v120, %v119
  %v153 = vunpack.c.l.b16 %v73
  %v154 = vunpack.c.l.b16 %v74
  %v155 = vunpack.c.l.b16 %v75
  %v156 = vunpack.c.l.b16 %v76
  %v157 = vunpack.c.l.b16 %v77
  %v158 = vunpack.c.l.b16 %v78
  %v159 = vunpack.c.l.b16 %v79
  %v160 = vunpack.c.l.b16 %v80
  %v161 = vunpack.c.l.b16 %v81
  %v162 = vunpack.c.l.b16 %v82
  %v163 = vunpack.c.l.b16 %v83
  %v164 = vunpack.c.l.b16 %v84
  %v165 = vunpack.c.l.b16 %v85
  %v166 = vunpack.c.l.b16 %v86
  %v167 = vunpack.c.l.b16 %v87
  %v168 = vunpack.c.l.b16 %v88
  %v169 = vpack.c.b16 %v154, %v153
  %v170 = vpack.c.b16 %v156, %v155
  %v171 = vpack.c.b16 %v158, %v157
  %v172 = vpack.c.b16 %v160, %v159
  %v173 = vpack.c.b16 %v162, %v161
  %v174 = vpack.c.b16 %v164, %v163
  %v175 = vpack.c.b16 %v166, %v165
  %v176 = vpack.c.b16 %v168, %v167
  %185 = vmatprep.subr.bf16.mxu0 0
  %186 = vmatpush1.bf16.msra.mxu0 %v176
  %187 = vmatprep.subr.bf16.mxu0 0
  %188 = vmatpush1.bf16.msra.mxu0 %v175
  %189 = vmatprep.subr.bf16.mxu0 0
  %190 = vmatpush1.bf16.msra.mxu0 %v174
  %191 = vmatprep.subr.bf16.mxu0 0
  %192 = vmatpush1.bf16.msra.mxu0 %v173
  %193 = vmatprep.subr.bf16.mxu0 0
  %194 = vmatpush1.bf16.msra.mxu0 %v172
  %195 = vmatprep.subr.bf16.mxu0 0
  %196 = vmatpush1.bf16.msra.mxu0 %v171
  %197 = vmatprep.subr.bf16.mxu0 0
  %198 = vmatpush1.bf16.msra.mxu0 %v170
  %199 = vmatprep.subr.bf16.mxu0 0
  %200 = vmatpush1.bf16.msra.mxu0 %v169
  %201 = vmatprep.subr.bf16.mxu0 0
  %202 = vmatpush2.bf16.msra.mxu0 0
  %203 = vmatprep.subr.bf16.mxu0 0
  %204 = vmatpush2.bf16.msra.mxu0 0
  %205 = vmatprep.subr.bf16.mxu0 0
  %206 = vmatpush2.bf16.msra.mxu0 0
  %207 = vmatprep.subr.bf16.mxu0 0
  %208 = vmatpush2.bf16.msra.mxu0 0
  %209 = vmatprep.subr.bf16.mxu0 0
  %210 = vmatpush2.bf16.msra.mxu0 0
  %211 = vmatprep.subr.bf16.mxu0 0
  %212 = vmatpush2.bf16.msra.mxu0 0
  %213 = vmatprep.subr.bf16.mxu0 0
  %214 = vmatpush2.bf16.msra.mxu0 0
  %215 = vmatprep.subr.bf16.mxu0 0
  %216 = vmatpush2.bf16.msra.mxu0 0
  %217 = vmatprep.mubr.bf16.mxu0 0
  %218 = vmatmul.mubr.bf16.gmra.mxu0 %v121
  %v219 = vpop.f32.mrf.mxu0
  %v220 = vadd.f32 0.0, %v219
  %v221 = vpop.f32.mrf.mxu0
  %v222 = vpop.f32.mrf.mxu0
  %v223 = vadd.f32 0.0, %v222
  %v224 = vpop.f32.mrf.mxu0
  %225 = vmatprep.mubr.bf16.mxu0 0
  %226 = vmatmul.mubr.bf16.gmra.mxu0 %v122
  %v227 = vpop.f32.mrf.mxu0
  %v228 = vadd.f32 0.0, %v227
  %v229 = vpop.f32.mrf.mxu0
  %v230 = vpop.f32.mrf.mxu0
  %v231 = vadd.f32 0.0, %v230
  %v232 = vpop.f32.mrf.mxu0
  %233 = vmatprep.mubr.bf16.mxu0 0
  %234 = vmatmul.mubr.bf16.gmra.mxu0 %v123
  %v235 = vpop.f32.mrf.mxu0
  %v236 = vadd.f32 0.0, %v235
  %v237 = vpop.f32.mrf.mxu0
  %v238 = vpop.f32.mrf.mxu0
  %v239 = vadd.f32 0.0, %v238
  %v240 = vpop.f32.mrf.mxu0
  %241 = vmatprep.mubr.bf16.mxu0 0
  %242 = vmatmul.mubr.bf16.gmra.mxu0 %v124
  %v243 = vpop.f32.mrf.mxu0
  %v244 = vadd.f32 0.0, %v243
  %v245 = vpop.f32.mrf.mxu0
  %v246 = vpop.f32.mrf.mxu0
  %v247 = vadd.f32 0.0, %v246
  %v248 = vpop.f32.mrf.mxu0
  %249 = vmatprep.mubr.bf16.mxu0 0
  %250 = vmatmul.mubr.bf16.gmra.mxu0 %v125
  %v251 = vpop.f32.mrf.mxu0
  %v252 = vadd.f32 0.0, %v251
  %v253 = vpop.f32.mrf.mxu0
  %v254 = vpop.f32.mrf.mxu0
  %v255 = vadd.f32 0.0, %v254
  %v256 = vpop.f32.mrf.mxu0
  %257 = vmatprep.mubr.bf16.mxu0 0
  %258 = vmatmul.mubr.bf16.gmra.mxu0 %v126
  %v259 = vpop.f32.mrf.mxu0
  %v260 = vadd.f32 0.0, %v259
  %v261 = vpop.f32.mrf.mxu0
  %v262 = vpop.f32.mrf.mxu0
  %v263 = vadd.f32 0.0, %v262
  %v264 = vpop.f32.mrf.mxu0
  %265 = vmatprep.mubr.bf16.mxu0 0
  %266 = vmatmul.mubr.bf16.gmra.mxu0 %v127
  %v267 = vpop.f32.mrf.mxu0
  %v268 = vadd.f32 0.0, %v267
  %v269 = vpop.f32.mrf.mxu0
  %v270 = vpop.f32.mrf.mxu0
  %v271 = vadd.f32 0.0, %v270
  %v272 = vpop.f32.mrf.mxu0
  %273 = vmatprep.mubr.bf16.mxu0 0
  %274 = vmatmul.mubr.bf16.gmra.mxu0 %v128
  %v275 = vpop.f32.mrf.mxu0
  %v276 = vadd.f32 0.0, %v275
  %v277 = vpop.f32.mrf.mxu0
  %v278 = vpop.f32.mrf.mxu0
  %v279 = vadd.f32 0.0, %v278
  %v280 = vpop.f32.mrf.mxu0
  %281 = vdwg.mxu0
  %v282 = vadd.f32 %v41, %v220
  %v283 = vadd.f32 %v42, %v223
  %v284 = vadd.f32 %v43, %v228
  %v285 = vadd.f32 %v44, %v231
  %v286 = vadd.f32 %v45, %v236
  %v287 = vadd.f32 %v46, %v239
  %v288 = vadd.f32 %v47, %v244
  %v289 = vadd.f32 %v48, %v247
  %v290 = vadd.f32 %v49, %v252
  %v291 = vadd.f32 %v50, %v255
  %v292 = vadd.f32 %v51, %v260
  %v293 = vadd.f32 %v52, %v263
  %v294 = vadd.f32 %v53, %v268
  %v295 = vadd.f32 %v54, %v271
  %v296 = vadd.f32 %v55, %v276
  %v297 = vadd.f32 %v56, %v279
  %298 = vst [vmem:[#allocation2] sm:$0xff] %v282
  %299 = vst [vmem:[#allocation2 + $0x8] sm:$0xff] %v283
  %300 = vst [vmem:[#allocation2 + $0x10] sm:$0xff] %v284
  %301 = vst [vmem:[#allocation2 + $0x18] sm:$0xff] %v285
  %302 = vst [vmem:[#allocation2 + $0x20] sm:$0xff] %v286
  %303 = vst [vmem:[#allocation2 + $0x28] sm:$0xff] %v287
  %304 = vst [vmem:[#allocation2 + $0x30] sm:$0xff] %v288
  %305 = vst [vmem:[#allocation2 + $0x38] sm:$0xff] %v289
  %306 = vst [vmem:[#allocation2 + $0x40] sm:$0xff] %v290
  %307 = vst [vmem:[#allocation2 + $0x48] sm:$0xff] %v291
  %308 = vst [vmem:[#allocation2 + $0x50] sm:$0xff] %v292
  %309 = vst [vmem:[#allocation2 + $0x58] sm:$0xff] %v293
  %310 = vst [vmem:[#allocation2 + $0x60] sm:$0xff] %v294
  %311 = vst [vmem:[#allocation2 + $0x68] sm:$0xff] %v295
  %312 = vst [vmem:[#allocation2 + $0x70] sm:$0xff] %v296
  %313 = vst [vmem:[#allocation2 + $0x78] sm:$0xff] %v297
  // Predicated region
  $region26: #{basic_block_forward.3} parent=0 // pred_check
    %p314 = pneg %p21
  $region27: #{basic_block_forward.3} parent=0 // pred_check_branch
    %316 = sbr.rel (%p314) target = $region29
  $region28: #{basic_block_forward.3} parent=0 // pred_region
    %v317 = vld [vmem:[%s3] sm:$0xf]
    %v318 = vld [vmem:[%s3 + $0x4] sm:$0xf]
    %v319 = vld [vmem:[%s3 + $0x8] sm:$0xf]
    %v320 = vld [vmem:[%s3 + $0xc] sm:$0xf]
    %v321 = vld [vmem:[%s3 + $0x10] sm:$0xf]
    %v322 = vld [vmem:[%s3 + $0x14] sm:$0xf]
    %v323 = vld [vmem:[%s3 + $0x18] sm:$0xf]
    %v324 = vld [vmem:[%s3 + $0x1c] sm:$0xf]
    %v325 = vld [vmem:[%s3 + $0x20] sm:$0xf]
    %v326 = vld [vmem:[%s3 + $0x24] sm:$0xf]
    %v327 = vld [vmem:[%s3 + $0x28] sm:$0xf]
    %v328 = vld [vmem:[%s3 + $0x2c] sm:$0xf]
    %v329 = vld [vmem:[%s3 + $0x30] sm:$0xf]
    %v330 = vld [vmem:[%s3 + $0x34] sm:$0xf]
    %v331 = vld [vmem:[%s3 + $0x38] sm:$0xf]
    %v332 = vld [vmem:[%s3 + $0x3c] sm:$0xf]
    %v333 = vld [vmem:[%s4] sm:$0xf]
    %v334 = vld [vmem:[%s4 + $0x4] sm:$0xf]
    %v335 = vld [vmem:[%s4 + $0x8] sm:$0xf]
    %v336 = vld [vmem:[%s4 + $0xc] sm:$0xf]
    %v337 = vld [vmem:[%s4 + $0x10] sm:$0xf]
    %v338 = vld [vmem:[%s4 + $0x14] sm:$0xf]
    %v339 = vld [vmem:[%s4 + $0x18] sm:$0xf]
    %v340 = vld [vmem:[%s4 + $0x1c] sm:$0xf]
    %v341 = vld [vmem:[%s4 + $0x20] sm:$0xf]
    %v342 = vld [vmem:[%s4 + $0x24] sm:$0xf]
    %v343 = vld [vmem:[%s4 + $0x28] sm:$0xf]
    %v344 = vld [vmem:[%s4 + $0x2c] sm:$0xf]
    %v345 = vld [vmem:[%s4 + $0x30] sm:$0xf]
    %v346 = vld [vmem:[%s4 + $0x34] sm:$0xf]
    %v347 = vld [vmem:[%s4 + $0x38] sm:$0xf]
    %v348 = vld [vmem:[%s4 + $0x3c] sm:$0xf]
    %v365 = vunpack.c.l.b16 %v317
    %v366 = vunpack.c.l.b16 %v318
    %v367 = vunpack.c.l.b16 %v319
    %v368 = vunpack.c.l.b16 %v320
    %v369 = vunpack.c.l.b16 %v321
    %v370 = vunpack.c.l.b16 %v322
    %v371 = vunpack.c.l.b16 %v323
    %v372 = vunpack.c.l.b16 %v324
    %v373 = vunpack.c.l.b16 %v325
    %v374 = vunpack.c.l.b16 %v326
    %v375 = vunpack.c.l.b16 %v327
    %v376 = vunpack.c.l.b16 %v328
    %v377 = vunpack.c.l.b16 %v329
    %v378 = vunpack.c.l.b16 %v330
    %v379 = vunpack.c.l.b16 %v331
    %v380 = vunpack.c.l.b16 %v332
    %v381 = vpack.c.b16 %v366, %v365
    %v382 = vpack.c.b16 %v368, %v367
    %v383 = vpack.c.b16 %v370, %v369
    %v384 = vpack.c.b16 %v372, %v371
    %v385 = vpack.c.b16 %v374, %v373
    %v386 = vpack.c.b16 %v376, %v375
    %v387 = vpack.c.b16 %v378, %v377
    %v388 = vpack.c.b16 %v380, %v379
    %v413 = vunpack.c.l.b16 %v333
    %v414 = vunpack.c.l.b16 %v334
    %v415 = vunpack.c.l.b16 %v335
    %v416 = vunpack.c.l.b16 %v336
    %v417 = vunpack.c.l.b16 %v337
    %v418 = vunpack.c.l.b16 %v338
    %v419 = vunpack.c.l.b16 %v339
    %v420 = vunpack.c.l.b16 %v340
    %v421 = vunpack.c.l.b16 %v341
    %v422 = vunpack.c.l.b16 %v342
    %v423 = vunpack.c.l.b16 %v343
    %v424 = vunpack.c.l.b16 %v344
    %v425 = vunpack.c.l.b16 %v345
    %v426 = vunpack.c.l.b16 %v346
    %v427 = vunpack.c.l.b16 %v347
    %v428 = vunpack.c.l.b16 %v348
    %v429 = vpack.c.b16 %v414, %v413
    %v430 = vpack.c.b16 %v416, %v415
    %v431 = vpack.c.b16 %v418, %v417
    %v432 = vpack.c.b16 %v420, %v419
    %v433 = vpack.c.b16 %v422, %v421
    %v434 = vpack.c.b16 %v424, %v423
    %v435 = vpack.c.b16 %v426, %v425
    %v436 = vpack.c.b16 %v428, %v427
    %445 = vmatprep.subr.bf16.mxu0 0
    %446 = vmatpush1.bf16.msra.mxu0 %v436
    %447 = vmatprep.subr.bf16.mxu0 0
    %448 = vmatpush1.bf16.msra.mxu0 %v435
    %449 = vmatprep.subr.bf16.mxu0 0
    %450 = vmatpush1.bf16.msra.mxu0 %v434
    %451 = vmatprep.subr.bf16.mxu0 0
    %452 = vmatpush1.bf16.msra.mxu0 %v433
    %453 = vmatprep.subr.bf16.mxu0 0
    %454 = vmatpush1.bf16.msra.mxu0 %v432
    %455 = vmatprep.subr.bf16.mxu0 0
    %456 = vmatpush1.bf16.msra.mxu0 %v431
    %457 = vmatprep.subr.bf16.mxu0 0
    %458 = vmatpush1.bf16.msra.mxu0 %v430
    %459 = vmatprep.subr.bf16.mxu0 0
    %460 = vmatpush1.bf16.msra.mxu0 %v429
    %461 = vmatprep.subr.bf16.mxu0 0
    %462 = vmatpush2.bf16.msra.mxu0 0
    %463 = vmatprep.subr.bf16.mxu0 0
    %464 = vmatpush2.bf16.msra.mxu0 0
    %465 = vmatprep.subr.bf16.mxu0 0
    %466 = vmatpush2.bf16.msra.mxu0 0
    %467 = vmatprep.subr.bf16.mxu0 0
    %468 = vmatpush2.bf16.msra.mxu0 0
    %469 = vmatprep.subr.bf16.mxu0 0
    %470 = vmatpush2.bf16.msra.mxu0 0
    %471 = vmatprep.subr.bf16.mxu0 0
    %472 = vmatpush2.bf16.msra.mxu0 0
    %473 = vmatprep.subr.bf16.mxu0 0
    %474 = vmatpush2.bf16.msra.mxu0 0
    %475 = vmatprep.subr.bf16.mxu0 0
    %476 = vmatpush2.bf16.msra.mxu0 0
    %477 = vmatprep.mubr.bf16.mxu0 0
    %478 = vmatmul.mubr.bf16.gmra.mxu0 %v381
    %v479 = vpop.f32.mrf.mxu0
    %v480 = vadd.f32 0.0, %v479
    %v481 = vpop.f32.mrf.mxu0
    %v482 = vpop.f32.mrf.mxu0
    %v483 = vadd.f32 0.0, %v482
    %v484 = vpop.f32.mrf.mxu0
    %485 = vmatprep.mubr.bf16.mxu0 0
    %486 = vmatmul.mubr.bf16.gmra.mxu0 %v382
    %v487 = vpop.f32.mrf.mxu0
    %v488 = vadd.f32 0.0, %v487
    %v489 = vpop.f32.mrf.mxu0
    %v490 = vpop.f32.mrf.mxu0
    %v491 = vadd.f32 0.0, %v490
    %v492 = vpop.f32.mrf.mxu0
    %493 = vmatprep.mubr.bf16.mxu0 0
    %494 = vmatmul.mubr.bf16.gmra.mxu0 %v383
    %v495 = vpop.f32.mrf.mxu0
    %v496 = vadd.f32 0.0, %v495
    %v497 = vpop.f32.mrf.mxu0
    %v498 = vpop.f32.mrf.mxu0
    %v499 = vadd.f32 0.0, %v498
    %v500 = vpop.f32.mrf.mxu0
    %501 = vmatprep.mubr.bf16.mxu0 0
    %502 = vmatmul.mubr.bf16.gmra.mxu0 %v384
    %v503 = vpop.f32.mrf.mxu0
    %v504 = vadd.f32 0.0, %v503
    %v505 = vpop.f32.mrf.mxu0
    %v506 = vpop.f32.mrf.mxu0
    %v507 = vadd.f32 0.0, %v506
    %v508 = vpop.f32.mrf.mxu0
    %509 = vmatprep.mubr.bf16.mxu0 0
    %510 = vmatmul.mubr.bf16.gmra.mxu0 %v385
    %v511 = vpop.f32.mrf.mxu0
    %v512 = vadd.f32 0.0, %v511
    %v513 = vpop.f32.mrf.mxu0
    %v514 = vpop.f32.mrf.mxu0
    %v515 = vadd.f32 0.0, %v514
    %v516 = vpop.f32.mrf.mxu0
    %517 = vmatprep.mubr.bf16.mxu0 0
    %518 = vmatmul.mubr.bf16.gmra.mxu0 %v386
    %v519 = vpop.f32.mrf.mxu0
    %v520 = vadd.f32 0.0, %v519
    %v521 = vpop.f32.mrf.mxu0
    %v522 = vpop.f32.mrf.mxu0
    %v523 = vadd.f32 0.0, %v522
    %v524 = vpop.f32.mrf.mxu0
    %525 = vmatprep.mubr.bf16.mxu0 0
    %526 = vmatmul.mubr.bf16.gmra.mxu0 %v387
    %v527 = vpop.f32.mrf.mxu0
    %v528 = vadd.f32 0.0, %v527
    %v529 = vpop.f32.mrf.mxu0
    %v530 = vpop.f32.mrf.mxu0
    %v531 = vadd.f32 0.0, %v530
    %v532 = vpop.f32.mrf.mxu0
    %533 = vmatprep.mubr.bf16.mxu0 0
    %534 = vmatmul.mubr.bf16.gmra.mxu0 %v388
    %v535 = vpop.f32.mrf.mxu0
    %v536 = vadd.f32 0.0, %v535
    %v537 = vpop.f32.mrf.mxu0
    %v538 = vpop.f32.mrf.mxu0
    %v539 = vadd.f32 0.0, %v538
    %v540 = vpop.f32.mrf.mxu0
    %541 = vdwg.mxu0
    %v542 = vld [vmem:[#allocation2] sm:$0xff]
    %v543 = vld [vmem:[#allocation2 + $0x8] sm:$0xff]
    %v544 = vld [vmem:[#allocation2 + $0x10] sm:$0xff]
    %v545 = vld [vmem:[#allocation2 + $0x18] sm:$0xff]
    %v546 = vld [vmem:[#allocation2 + $0x20] sm:$0xff]
    %v547 = vld [vmem:[#allocation2 + $0x28] sm:$0xff]
    %v548 = vld [vmem:[#allocation2 + $0x30] sm:$0xff]
    %v549 = vld [vmem:[#allocation2 + $0x38] sm:$0xff]
    %v550 = vld [vmem:[#allocation2 + $0x40] sm:$0xff]
    %v551 = vld [vmem:[#allocation2 + $0x48] sm:$0xff]
    %v552 = vld [vmem:[#allocation2 + $0x50] sm:$0xff]
    %v553 = vld [vmem:[#allocation2 + $0x58] sm:$0xff]
    %v554 = vld [vmem:[#allocation2 + $0x60] sm:$0xff]
    %v555 = vld [vmem:[#allocation2 + $0x68] sm:$0xff]
    %v556 = vld [vmem:[#allocation2 + $0x70] sm:$0xff]
    %v557 = vld [vmem:[#allocation2 + $0x78] sm:$0xff]
    %v558 = vld [vmem:[%s2] sm:$0x1]
    %v560 = vlaneseq
    %v561 = vshrl.u32 %v560, 7
    %v562 = vsub.s32 0, %v561
    %v563 = vrot.slane %v558, %v562
    %v565 = vadd.f32 %v542, %v563
    %v566 = vadd.f32 %v543, %v563
    %v567 = vadd.f32 %v544, %v563
    %v568 = vadd.f32 %v545, %v563
    %v569 = vadd.f32 %v546, %v563
    %v570 = vadd.f32 %v547, %v563
    %v571 = vadd.f32 %v548, %v563
    %v572 = vadd.f32 %v549, %v563
    %v573 = vadd.f32 %v550, %v563
    %v574 = vadd.f32 %v551, %v563
    %v575 = vadd.f32 %v552, %v563
    %v576 = vadd.f32 %v553, %v563
    %v577 = vadd.f32 %v554, %v563
    %v578 = vadd.f32 %v555, %v563
    %v579 = vadd.f32 %v556, %v563
    %v580 = vadd.f32 %v557, %v563
    %v581 = vadd.f32 %v565, %v480
    %v582 = vadd.f32 %v566, %v483
    %v583 = vadd.f32 %v567, %v488
    %v584 = vadd.f32 %v568, %v491
    %v585 = vadd.f32 %v569, %v496
    %v586 = vadd.f32 %v570, %v499
    %v587 = vadd.f32 %v571, %v504
    %v588 = vadd.f32 %v572, %v507
    %v589 = vadd.f32 %v573, %v512
    %v590 = vadd.f32 %v574, %v515
    %v591 = vadd.f32 %v575, %v520
    %v592 = vadd.f32 %v576, %v523
    %v593 = vadd.f32 %v577, %v528
    %v594 = vadd.f32 %v578, %v531
    %v595 = vadd.f32 %v579, %v536
    %v596 = vadd.f32 %v580, %v539
    %v597 = vmax.f32 %v581, 0.0
    %v598 = vmax.f32 %v582, 0.0
    %v599 = vmax.f32 %v583, 0.0
    %v600 = vmax.f32 %v584, 0.0
    %v601 = vmax.f32 %v585, 0.0
    %v602 = vmax.f32 %v586, 0.0
    %v603 = vmax.f32 %v587, 0.0
    %v604 = vmax.f32 %v588, 0.0
    %v605 = vmax.f32 %v589, 0.0
    %v606 = vmax.f32 %v590, 0.0
    %v607 = vmax.f32 %v591, 0.0
    %v608 = vmax.f32 %v592, 0.0
    %v609 = vmax.f32 %v593, 0.0
    %v610 = vmax.f32 %v594, 0.0
    %v611 = vmax.f32 %v595, 0.0
    %v612 = vmax.f32 %v596, 0.0
    %613 = vst [vmem:[%s5] sm:$0xff] %v597
    %614 = vst [vmem:[%s5 + $0x8] sm:$0xff] %v598
    %615 = vst [vmem:[%s5 + $0x10] sm:$0xff] %v599
    %616 = vst [vmem:[%s5 + $0x18] sm:$0xff] %v600
    %617 = vst [vmem:[%s5 + $0x20] sm:$0xff] %v601
    %618 = vst [vmem:[%s5 + $0x28] sm:$0xff] %v602
    %619 = vst [vmem:[%s5 + $0x30] sm:$0xff] %v603
    %620 = vst [vmem:[%s5 + $0x38] sm:$0xff] %v604
    %621 = vst [vmem:[%s5 + $0x40] sm:$0xff] %v605
    %622 = vst [vmem:[%s5 + $0x48] sm:$0xff] %v606
    %623 = vst [vmem:[%s5 + $0x50] sm:$0xff] %v607
    %624 = vst [vmem:[%s5 + $0x58] sm:$0xff] %v608
    %625 = vst [vmem:[%s5 + $0x60] sm:$0xff] %v609
    %626 = vst [vmem:[%s5 + $0x68] sm:$0xff] %v610
    %627 = vst [vmem:[%s5 + $0x70] sm:$0xff] %v611
    %628 = vst [vmem:[%s5 + $0x78] sm:$0xff] %v612
  $region29: #{basic_block_forward.3} parent=0 // pred_fallthru
    _
  // Predicated region
  $region30: #{basic_block_forward.3} parent=0 // pred_check
    _
  $region31: #{basic_block_forward.3} parent=0 // pred_check_branch
    %630 = sbr.rel (0) target = $region33
  $region32: #{basic_block_forward.3} parent=0 // pred_region
    _
  $region33: #{basic_block_forward.3} parent=0 // pred_fallthru
    _
  // Predicated region
  $region34: #{basic_block_forward.3} parent=0 // pred_check
    _
  $region35: #{basic_block_forward.3} parent=0 // pred_check_branch
    %632 = sbr.rel (0) target = $region37
  $region36: #{basic_block_forward.3} parent=0 // pred_region
    _
  $region37: #{basic_block_forward.3} parent=0 // pred_fallthru
    _

</llo_original>
